<compile_context>
chip_gen: v5e
topology: v5e:2x2
jax: 0.10.0
libtpu: 0.0.40
codegen_flags: <defaults>
</compile_context>

<pallas_src>
import math
import numpy as np
import jax
import jax.numpy as jnp
from jax.experimental import pallas as pl
from jax.experimental.pallas import tpu as pltpu


def _cdiv(a, b):
    return -(-a // b)


def _rup(a, m):
    return _cdiv(a, m) * m


# ----------------------------------------------------------------------------
# Filter design: scipy.signal.cheby1(8, 0.05, 1/r, 'lowpass', output='sos')
# re-implemented in numpy so the script is fully self-contained.
# ----------------------------------------------------------------------------
def _cheby1_sos(order, rp_db, wn):
    eps = np.sqrt(10.0 ** (0.1 * rp_db) - 1.0)
    mu = np.arcsinh(1.0 / eps) / order
    m = np.arange(-order + 1, order, 2)
    theta = np.pi * m / (2.0 * order)
    p = -np.sinh(mu + 1j * theta)
    k = np.prod(-p).real
    if order % 2 == 0:
        k = k / np.sqrt(1.0 + eps * eps)
    fs = 2.0
    warped = 2.0 * fs * np.tan(np.pi * wn / fs)
    p = p * warped
    k = k * warped ** order                       # lp2lp_zpk (no finite zeros)
    fs2 = 2.0 * fs
    k = float(np.real(k / np.prod(fs2 - p)))      # bilinear gain (empty zero set)
    p = (fs2 + p) / (fs2 - p)                     # bilinear poles
    # zpk2sos: `order` zeros at z=-1; poles closest to unit circle go LAST;
    # overall gain in the first section (matches scipy's default pairing here).
    pairs = p[p.imag > 0]
    pairs = pairs[np.argsort(-np.abs(1.0 - np.abs(pairs)))]
    n_sec = order // 2
    sos = np.zeros((n_sec, 6), dtype=np.float64)
    for i, pp in enumerate(pairs):
        gain = k if i == 0 else 1.0
        sos[i, 0:3] = gain * np.array([1.0, 2.0, 1.0])
        sos[i, 3] = 1.0
        sos[i, 4] = -2.0 * pp.real
        sos[i, 5] = float((pp * np.conj(pp)).real)
    return sos


# ----------------------------------------------------------------------------
# Host-side precompute (float64 -> float32): one AUGMENTED matrix per section,
# shape (K, S) with K = S + 128:
#   rows [0:s_in or 0:S] : M^T  (reverse-time block impulse-response Toeplitz,
#                                section 0 fused with the repeat matrix R)
#   rows [S:S+4]         : G^T  (response to state [x_prev1,x_prev2,y_prev1,y_prev2])
#   all other rows       : 0    (so stale/zero scratch columns contribute nothing)
# Rows/cols are in NATURAL time order but encode the REVERSE-time recursion,
# so no in-kernel flips are needed.
# ----------------------------------------------------------------------------
def _build_block_matrices(sos, S, r_in):
    n_sec = sos.shape[0]
    s_in = S // r_in
    idx = np.arange(S)
    d = idx[:, None] - idx[None, :]
    # repeat_interleave in natural row order within a block
    R = (idx[:, None] // r_in == np.arange(s_in)[None, :]).astype(np.float64)

    K = S + 128
    m_aug = np.zeros((n_sec, K, S), np.float64)
    for sec in range(n_sec):
        b0, b1, b2, a0, a1, a2 = [float(v) for v in sos[sec]]
        b0, b1, b2, a1, a2 = b0 / a0, b1 / a0, b2 / a0, a1 / a0, a2 / a0

        # full-biquad impulse response
        hc = np.zeros(S, np.float64)
        xm1 = xm2 = ym1 = ym2 = 0.0
        for nn in range(S):
            xx = 1.0 if nn == 0 else 0.0
            yy = b0 * xx + b1 * xm1 + b2 * xm2 - a1 * ym1 - a2 * ym2
            hc[nn] = yy
            xm2, xm1 = xm1, xx
            ym2, ym1 = ym1, yy
        Mf = np.where(d >= 0, hc[np.clip(d, 0, S - 1)], 0.0)   # lower-tri Toeplitz

        # responses to unit initial conditions [x[-1], x[-2], y[-1], y[-2]]
        Gf = np.zeros((S, 4), np.float64)
        for w in range(4):
            xm1 = 1.0 if w == 0 else 0.0
            xm2 = 1.0 if w == 1 else 0.0
            ym1 = 1.0 if w == 2 else 0.0
            ym2 = 1.0 if w == 3 else 0.0
            for nn in range(S):
                yy = b1 * xm1 + b2 * xm2 - a1 * ym1 - a2 * ym2
                Gf[nn, w] = yy
                xm2, xm1 = xm1, 0.0
                ym2, ym1 = ym1, yy

        # reverse-time recursion on natural-order rows/cols
        M_rev = Mf[::-1, ::-1]
        G_rev = Gf[::-1, :]
        if sec == 0:
            M_rev = M_rev @ R                     # (S, s_in): fuse the upsample
            m_aug[sec, :s_in, :] = M_rev.T
        else:
            m_aug[sec, :S, :] = M_rev.T
        m_aug[sec, S:S + 4, :] = G_rev.T
    return m_aug.astype(np.float32)


# ----------------------------------------------------------------------------
# Pallas kernel: per (sublane-tile, time-block) grid step, run k_sub sub-blocks
# (reverse natural order) through the 4-section cascade, one fused MXU matmul
# per section; per-section [x1, x2, y1, y2] state lives in the xaug scratch at
# columns [S:S+4] and persists across the reverse-time sweep.
# ----------------------------------------------------------------------------
def _make_kernel(n_sec, k_sub, s_in, S, r_in):
    def kernel(m_ref, x_ref, o_ref, xaug_ref):
        # new sublane tile -> zero the augmented-input scratch (zeros both the
        # carried IIR state and the never-written padding columns).
        @pl.when(pl.program_id(1) == 0)
        def _():
            xaug_ref[...] = jnp.zeros_like(xaug_ref)

        # sub-blocks processed in reverse natural-time order within the block
        for jj in range(k_sub - 1, -1, -1):
            cur = x_ref[:, jj * s_in:(jj + 1) * s_in]     # (n_tile, s_in) sec-0 input
            for s in range(n_sec):
                w = s_in if s == 0 else S
                xaug_ref[s, :, 0:w] = cur                 # x part of augmented input
                # one fused matmul: [x | 0 | state] @ [M^T ; 0 ; G^T]
                y = jnp.dot(xaug_ref[s], m_ref[s],
                            preferred_element_type=jnp.float32)

                # state for the NEXT (earlier-in-time) block:
                #   x_prev1/x_prev2 = this block's section input at natural
                #   cols 0/1 (for fused section 0 with r>=2 both map to input
                #   col 0); y_prev1/y_prev2 = UNCLAMPED outputs at cols 0/1.
                if s == 0 and r_in > 1:
                    xaug_ref[s, :, S + 0:S + 1] = cur[:, 0:1]
                    xaug_ref[s, :, S + 1:S + 2] = cur[:, 0:1]
                else:
                    xaug_ref[s, :, S + 0:S + 2] = cur[:, 0:2]
                xaug_ref[s, :, S + 2:S + 4] = y[:, 0:2]

                # torchaudio lfilter clamps each stage's returned waveform
                cur = jnp.clip(y, -1.0, 1.0)

            o_ref[:, jj * S:(jj + 1) * S] = cur
    return kernel


def cheby_upsample(x, r):
    """JAX/Pallas equivalent of ChebyUpsample(r).forward(x).

    x: (B, C, T) float32, time last.   returns: (B, C, T*r) float32
    """
    # TODO(synk): the torch .cpu()/.to(device) round-trip is device plumbing
    # with no TPU-kernel equivalent; everything stays on-device here.
    r = int(r)
    sos = _cheby1_sos(8, 0.05, 1.0 / r)
    n_sec = int(sos.shape[0])
    x = x.astype(jnp.float32)
    b, c, t = x.shape
    n = b * c
    t_up = t * r

    # block sizing: S (upsampled samples per sub-block) is the smallest multiple
    # of 128 of the form s_in*r with s_in a multiple of 8 (so all block lane
    # widths stay 128-aligned and the repeat can be fused into section 0).
    s_in = max(8, 128 // math.gcd(r, 128))
    S = s_in * r
    if r > 1 and S <= 768:
        r_in = r
        sig = x.reshape(n, t)                    # feed ORIGINAL signal (fused repeat)
        t_in = t
    else:
        # TODO(synk): very large r (or r == 1) — fall back to a materialized
        # repeat_interleave in HBM; the filter cascade still runs fused below.
        r_in = 1
        s_in = S = 256
        sig = jnp.repeat(x.reshape(n, t), r, axis=-1)
        t_in = t * r

    # time tiling: k_sub S-sized sub-blocks per grid step (amortizes per-step
    # pipeline overhead); input lane width k_sub*s_in is a multiple of 128
    # unless a single block covers the whole (padded) signal.
    n_sub_total = _cdiv(t_in, s_in)
    k_align = (128 // s_in) if s_in < 128 else 1
    k_sub = k_align * max(1, 512 // (k_align * S))
    if n_sub_total <= k_sub:
        k_sub, num_tb = max(1, n_sub_total), 1
    else:
        num_tb = _cdiv(t_in, k_sub * s_in)
    t_in_pad = num_tb * k_sub * s_in
    t_out_pad = num_tb * k_sub * S

    # batch*channel (sublane) tiling: >=2 "parallel" blocks whenever possible so
    # both v7x TensorCores get work; pad n only to a multiple of 8 per tile.
    n8 = _rup(n, 8)
    if n8 <= 8:
        n_tile, n_lb = n8, 1
    else:
        n_lb = max(2, _cdiv(n8, 256))
        n_tile = _rup(_cdiv(n8, n_lb), 8)
        n_lb = _cdiv(n8, n_tile)
    n_pad = n_lb * n_tile

    # zero padding at the end of time is exact: padded samples are processed
    # first in reverse time with zero state and contribute nothing.
    if (n_pad, t_in_pad) != (n, t_in):
        sig = jnp.zeros((n_pad, t_in_pad), jnp.float32).at[:n, :t_in].set(sig)

    m_aug = jnp.asarray(_build_block_matrices(sos, S, r_in))   # (n_sec, S+128, S)

    out = pl.pallas_call(
        _make_kernel(n_sec, k_sub, s_in, S, r_in),
        out_shape=jax.ShapeDtypeStruct((n_pad, t_out_pad), jnp.float32),
        grid=(n_lb, num_tb),
        in_specs=[
            pl.BlockSpec((n_sec, S + 128, S), lambda lb, tb: (0, 0, 0)),
            # time blocks visited in reverse natural order (flip/filter/flip)
            pl.BlockSpec((n_tile, k_sub * s_in),
                         lambda lb, tb: (lb, num_tb - 1 - tb)),
        ],
        out_specs=pl.BlockSpec((n_tile, k_sub * S),
                               lambda lb, tb: (lb, num_tb - 1 - tb)),
        scratch_shapes=[pltpu.VMEM((n_sec, n_tile, S + 128), jnp.float32)],
        compiler_params=pltpu.CompilerParams(
            dimension_semantics=("parallel", "arbitrary")),
    )(m_aug, sig)

    return out[:n, :t_up].reshape(b, c, t_up)


# ----------------------------------------------------------------------------
# Serial NumPy reference of the module semantics (for self-checking).
# ----------------------------------------------------------------------------
def _reference_serial(x_np, r, sos):
    up = np.repeat(x_np.astype(np.float64), r, axis=-1)
    sig = up[..., ::-1].copy()                   # flip(-1)
    for row in sos:
        b0, b1, b2, a0, a1, a2 = [float(v) for v in row]
        b0, b1, b2, a1, a2 = b0 / a0, b1 / a0, b2 / a0, a1 / a0, a2 / a0
        out = np.zeros_like(sig)
        sh = sig.shape[:-1]
        xm1 = np.zeros(sh); xm2 = np.zeros(sh); ym1 = np.zeros(sh); ym2 = np.zeros(sh)
        for nn in range(sig.shape[-1]):
            xx = sig[..., nn]
            yy = b0 * xx + b1 * xm1 + b2 * xm2 - a1 * ym1 - a2 * ym2
            out[..., nn] = yy
            xm2, xm1 = xm1, xx
            ym2, ym1 = ym1, yy
        sig = np.clip(out, -1.0, 1.0)            # clamp on each stage's output
    return sig[..., ::-1]                        # flip back


if __name__ == "__main__":
    def _check(x_in, r, tol):
        y = jax.block_until_ready(cheby_upsample(x_in, r))
        assert y.shape == x_in.shape[:-1] + (x_in.shape[-1] * r,), y.shape
        assert bool(jnp.all(jnp.isfinite(y)))
        ref = _reference_serial(np.asarray(x_in, np.float64), r,
                                _cheby1_sos(8, 0.05, 1.0 / r))
        err = float(np.max(np.abs(np.asarray(y, np.float64) - ref)))
        assert err < tol, f"mismatch vs serial reference: {err} (tol {tol})"

    # case 1: small shapes consistent with the module
    x1 = 0.1 * jax.random.normal(jax.random.PRNGKey(0), (2, 4, 16), dtype=jnp.float32)
    _check(x1, 2, 5e-4)

    # case 2: many channels (two sublane blocks + n padding) and r=4 fused repeat
    x2 = 0.2 * jax.random.normal(jax.random.PRNGKey(1), (3, 50, 100), dtype=jnp.float32)
    _check(x2, 4, 5e-4)

    # case 3: long signal -> multiple time grid steps (cross-step IIR state carry)
    #         plus within-step sub-block carry and end-of-time zero padding
    x3 = 0.2 * jax.random.normal(jax.random.PRNGKey(2), (1, 3, 400), dtype=jnp.float32)
    _check(x3, 2, 1e-3)

    # case 4: large prime r -> materialized-repeat fallback path (r_in = 1)
    x4 = 0.2 * jax.random.normal(jax.random.PRNGKey(3), (1, 2, 8), dtype=jnp.float32)
    _check(x4, 7, 1e-3)

    print("KERNEL_OK")
</pallas_src>

<mosaic_0001>
module attributes {stable_mosaic.version = 11 : i64} {
  func.func @kernel(%arg0: i32, %arg1: i32, %arg2: memref<4x256x128xf32, #tpu.memory_space<vmem>>, %arg3: memref<8x64xf32, #tpu.memory_space<vmem>>, %arg4: memref<8x128xf32, #tpu.memory_space<vmem>>, %arg5: memref<4x8x256xf32, #tpu.memory_space<vmem>>) attributes {dimension_semantics = [#tpu.dimension_semantics<parallel>, #tpu.dimension_semantics<arbitrary>], iteration_bounds = array<i64: 1, 1>, scalar_prefetch = 0 : i64, scratch_operands = 1 : i64, tpu.core_type = #tpu.core_type<tc>, window_params = [{pipeline_mode = #tpu.pipeline_mode<synchronous>, transform_indices = @transform_0, window_bounds = array<i64: 4, 256, 128>}, {transform_indices = @transform_1, window_bounds = array<i64: 8, 64>}, {transform_indices = @transform_2, window_bounds = array<i64: 8, 128>}]} {
    %c0_i32 = arith.constant 0 : i32
    %0 = arith.cmpi eq, %arg1, %c0_i32 : i32
    %1 = arith.extui %0 : i1 to i32
    %c0_i32_0 = arith.constant 0 : i32
    %2 = arith.cmpi ne, %1, %c0_i32_0 : i32
    scf.if %2 {
      %cst_72 = arith.constant 0.000000e+00 : f32
      %89 = vector.broadcast %cst_72 : f32 to vector<4x8x256xf32>
      %c0_73 = arith.constant 0 : index
      %c0_74 = arith.constant 0 : index
      %c0_75 = arith.constant 0 : index
      %90 = vector.load %arg5[%c0_73, %c0_74, %c0_75] : memref<4x8x256xf32, #tpu.memory_space<vmem>>, vector<4x8x256xf32>
      tpu.vector_store %arg5[%c0_73, %c0_74, %c0_75], %89 {strides = array<i32>} : memref<4x8x256xf32, #tpu.memory_space<vmem>>, vector<4x8x256xf32>,
    } else {
    }
    %c0 = arith.constant 0 : index
    %c0_1 = arith.constant 0 : index
    %3 = vector.load %arg3[%c0, %c0_1] : memref<8x64xf32, #tpu.memory_space<vmem>>, vector<8x64xf32>
    %c0_2 = arith.constant 0 : index
    %c0_3 = arith.constant 0 : index
    %c0_4 = arith.constant 0 : index
    %4 = vector.load %arg5[%c0_2, %c0_3, %c0_4] : memref<4x8x256xf32, #tpu.memory_space<vmem>>, vector<1x8x64xf32>
    %5 = vector.shape_cast %4 : vector<1x8x64xf32> to vector<8x64xf32>
    %6 = vector.shape_cast %3 : vector<8x64xf32> to vector<1x8x64xf32>
    tpu.vector_store %arg5[%c0_2, %c0_3, %c0_4], %6 {strides = array<i32>} : memref<4x8x256xf32, #tpu.memory_space<vmem>>, vector<1x8x64xf32>,
    %c0_5 = arith.constant 0 : index
    %c0_6 = arith.constant 0 : index
    %c0_7 = arith.constant 0 : index
    %7 = vector.load %arg5[%c0_5, %c0_6, %c0_7] : memref<4x8x256xf32, #tpu.memory_space<vmem>>, vector<1x8x256xf32>
    %8 = vector.shape_cast %7 : vector<1x8x256xf32> to vector<8x256xf32>
    %c0_8 = arith.constant 0 : index
    %c0_9 = arith.constant 0 : index
    %c0_10 = arith.constant 0 : index
    %9 = vector.load %arg2[%c0_8, %c0_9, %c0_10] : memref<4x256x128xf32, #tpu.memory_space<vmem>>, vector<1x256x128xf32>
    %10 = vector.shape_cast %9 : vector<1x256x128xf32> to vector<256x128xf32>
    %cst = arith.constant dense<0.000000e+00> : vector<8x128xf32>
    %11 = tpu.matmul %8, %10, %cst {dimension_numbers = #tpu.dot_dimension_numbers<[1], [0], [0], [1], [0, 0, 1, 1], [], []>} : vector<8x256xf32>, vector<256x128xf32>, vector<8x128xf32> -> vector<8x128xf32>
    %12 = vector.extract_strided_slice %3 {offsets = [0, 0], sizes = [8, 1], strides = [1, 1]} : vector<8x64xf32> to vector<8x1xf32>
    %c0_11 = arith.constant 0 : index
    %c0_12 = arith.constant 0 : index
    %c128 = arith.constant 128 : index
    %13 = vector.load %arg5[%c0_11, %c0_12, %c128] : memref<4x8x256xf32, #tpu.memory_space<vmem>>, vector<1x8x1xf32>
    %14 = vector.shape_cast %13 : vector<1x8x1xf32> to vector<8x1xf32>
    %15 = vector.shape_cast %12 : vector<8x1xf32> to vector<1x8x1xf32>
    tpu.vector_store %arg5[%c0_11, %c0_12, %c128], %15 {strides = array<i32>} : memref<4x8x256xf32, #tpu.memory_space<vmem>>, vector<1x8x1xf32>,
    %16 = vector.extract_strided_slice %3 {offsets = [0, 0], sizes = [8, 1], strides = [1, 1]} : vector<8x64xf32> to vector<8x1xf32>
    %c0_13 = arith.constant 0 : index
    %c0_14 = arith.constant 0 : index
    %c129 = arith.constant 129 : index
    %17 = vector.load %arg5[%c0_13, %c0_14, %c129] : memref<4x8x256xf32, #tpu.memory_space<vmem>>, vector<1x8x1xf32>
    %18 = vector.shape_cast %17 : vector<1x8x1xf32> to vector<8x1xf32>
    %19 = vector.shape_cast %16 : vector<8x1xf32> to vector<1x8x1xf32>
    tpu.vector_store %arg5[%c0_13, %c0_14, %c129], %19 {strides = array<i32>} : memref<4x8x256xf32, #tpu.memory_space<vmem>>, vector<1x8x1xf32>,
    %20 = vector.extract_strided_slice %11 {offsets = [0, 0], sizes = [8, 2], strides = [1, 1]} : vector<8x128xf32> to vector<8x2xf32>
    %c0_15 = arith.constant 0 : index
    %c0_16 = arith.constant 0 : index
    %c130 = arith.constant 130 : index
    %21 = vector.load %arg5[%c0_15, %c0_16, %c130] : memref<4x8x256xf32, #tpu.memory_space<vmem>>, vector<1x8x2xf32>
    %22 = vector.shape_cast %21 : vector<1x8x2xf32> to vector<8x2xf32>
    %23 = vector.shape_cast %20 : vector<8x2xf32> to vector<1x8x2xf32>
    tpu.vector_store %arg5[%c0_15, %c0_16, %c130], %23 {strides = array<i32>} : memref<4x8x256xf32, #tpu.memory_space<vmem>>, vector<1x8x2xf32>,
    %cst_17 = arith.constant -1.000000e+00 : f32
    %cst_18 = arith.constant 1.000000e+00 : f32
    %24 = vector.broadcast %cst_17 : f32 to vector<8x128xf32>
    %25 = arith.maximumf %24, %11 : vector<8x128xf32>
    %26 = vector.broadcast %cst_18 : f32 to vector<8x128xf32>
    %27 = arith.minimumf %26, %25 : vector<8x128xf32>
    %c1 = arith.constant 1 : index
    %c0_19 = arith.constant 0 : index
    %c0_20 = arith.constant 0 : index
    %28 = vector.load %arg5[%c1, %c0_19, %c0_20] : memref<4x8x256xf32, #tpu.memory_space<vmem>>, vector<1x8x128xf32>
    %29 = vector.shape_cast %28 : vector<1x8x128xf32> to vector<8x128xf32>
    %30 = vector.shape_cast %27 : vector<8x128xf32> to vector<1x8x128xf32>
    tpu.vector_store %arg5[%c1, %c0_19, %c0_20], %30 {strides = array<i32>} : memref<4x8x256xf32, #tpu.memory_space<vmem>>, vector<1x8x128xf32>,
    %c1_21 = arith.constant 1 : index
    %c0_22 = arith.constant 0 : index
    %c0_23 = arith.constant 0 : index
    %31 = vector.load %arg5[%c1_21, %c0_22, %c0_23] : memref<4x8x256xf32, #tpu.memory_space<vmem>>, vector<1x8x256xf32>
    %32 = vector.shape_cast %31 : vector<1x8x256xf32> to vector<8x256xf32>
    %c1_24 = arith.constant 1 : index
    %c0_25 = arith.constant 0 : index
    %c0_26 = arith.constant 0 : index
    %33 = vector.load %arg2[%c1_24, %c0_25, %c0_26] : memref<4x256x128xf32, #tpu.memory_space<vmem>>, vector<1x256x128xf32>
    %34 = vector.shape_cast %33 : vector<1x256x128xf32> to vector<256x128xf32>
    %cst_27 = arith.constant dense<0.000000e+00> : vector<8x128xf32>
    %35 = tpu.matmul %32, %34, %cst_27 {dimension_numbers = #tpu.dot_dimension_numbers<[1], [0], [0], [1], [0, 0, 1, 1], [], []>} : vector<8x256xf32>, vector<256x128xf32>, vector<8x128xf32> -> vector<8x128xf32>
    %36 = vector.extract_strided_slice %27 {offsets = [0, 0], sizes = [8, 2], strides = [1, 1]} : vector<8x128xf32> to vector<8x2xf32>
    %c1_28 = arith.constant 1 : index
    %c0_29 = arith.constant 0 : index
    %c128_30 = arith.constant 128 : index
    %37 = vector.load %arg5[%c1_28, %c0_29, %c128_30] : memref<4x8x256xf32, #tpu.memory_space<vmem>>, vector<1x8x2xf32>
    %38 = vector.shape_cast %37 : vector<1x8x2xf32> to vector<8x2xf32>
    %39 = vector.shape_cast %36 : vector<8x2xf32> to vector<1x8x2xf32>
    tpu.vector_store %arg5[%c1_28, %c0_29, %c128_30], %39 {strides = array<i32>} : memref<4x8x256xf32, #tpu.memory_space<vmem>>, vector<1x8x2xf32>,
    %40 = vector.extract_strided_slice %35 {offsets = [0, 0], sizes = [8, 2], strides = [1, 1]} : vector<8x128xf32> to vector<8x2xf32>
    %c1_31 = arith.constant 1 : index
    %c0_32 = arith.constant 0 : index
    %c130_33 = arith.constant 130 : index
    %41 = vector.load %arg5[%c1_31, %c0_32, %c130_33] : memref<4x8x256xf32, #tpu.memory_space<vmem>>, vector<1x8x2xf32>
    %42 = vector.shape_cast %41 : vector<1x8x2xf32> to vector<8x2xf32>
    %43 = vector.shape_cast %40 : vector<8x2xf32> to vector<1x8x2xf32>
    tpu.vector_store %arg5[%c1_31, %c0_32, %c130_33], %43 {strides = array<i32>} : memref<4x8x256xf32, #tpu.memory_space<vmem>>, vector<1x8x2xf32>,
    %cst_34 = arith.constant -1.000000e+00 : f32
    %cst_35 = arith.constant 1.000000e+00 : f32
    %44 = vector.broadcast %cst_34 : f32 to vector<8x128xf32>
    %45 = arith.maximumf %44, %35 : vector<8x128xf32>
    %46 = vector.broadcast %cst_35 : f32 to vector<8x128xf32>
    %47 = arith.minimumf %46, %45 : vector<8x128xf32>
    %c2 = arith.constant 2 : index
    %c0_36 = arith.constant 0 : index
    %c0_37 = arith.constant 0 : index
    %48 = vector.load %arg5[%c2, %c0_36, %c0_37] : memref<4x8x256xf32, #tpu.memory_space<vmem>>, vector<1x8x128xf32>
    %49 = vector.shape_cast %48 : vector<1x8x128xf32> to vector<8x128xf32>
    %50 = vector.shape_cast %47 : vector<8x128xf32> to vector<1x8x128xf32>
    tpu.vector_store %arg5[%c2, %c0_36, %c0_37], %50 {strides = array<i32>} : memref<4x8x256xf32, #tpu.memory_space<vmem>>, vector<1x8x128xf32>,
    %c2_38 = arith.constant 2 : index
    %c0_39 = arith.constant 0 : index
    %c0_40 = arith.constant 0 : index
    %51 = vector.load %arg5[%c2_38, %c0_39, %c0_40] : memref<4x8x256xf32, #tpu.memory_space<vmem>>, vector<1x8x256xf32>
    %52 = vector.shape_cast %51 : vector<1x8x256xf32> to vector<8x256xf32>
    %c2_41 = arith.constant 2 : index
    %c0_42 = arith.constant 0 : index
    %c0_43 = arith.constant 0 : index
    %53 = vector.load %arg2[%c2_41, %c0_42, %c0_43] : memref<4x256x128xf32, #tpu.memory_space<vmem>>, vector<1x256x128xf32>
    %54 = vector.shape_cast %53 : vector<1x256x128xf32> to vector<256x128xf32>
    %cst_44 = arith.constant dense<0.000000e+00> : vector<8x128xf32>
    %55 = tpu.matmul %52, %54, %cst_44 {dimension_numbers = #tpu.dot_dimension_numbers<[1], [0], [0], [1], [0, 0, 1, 1], [], []>} : vector<8x256xf32>, vector<256x128xf32>, vector<8x128xf32> -> vector<8x128xf32>
    %56 = vector.extract_strided_slice %47 {offsets = [0, 0], sizes = [8, 2], strides = [1, 1]} : vector<8x128xf32> to vector<8x2xf32>
    %c2_45 = arith.constant 2 : index
    %c0_46 = arith.constant 0 : index
    %c128_47 = arith.constant 128 : index
    %57 = vector.load %arg5[%c2_45, %c0_46, %c128_47] : memref<4x8x256xf32, #tpu.memory_space<vmem>>, vector<1x8x2xf32>
    %58 = vector.shape_cast %57 : vector<1x8x2xf32> to vector<8x2xf32>
    %59 = vector.shape_cast %56 : vector<8x2xf32> to vector<1x8x2xf32>
    tpu.vector_store %arg5[%c2_45, %c0_46, %c128_47], %59 {strides = array<i32>} : memref<4x8x256xf32, #tpu.memory_space<vmem>>, vector<1x8x2xf32>,
    %60 = vector.extract_strided_slice %55 {offsets = [0, 0], sizes = [8, 2], strides = [1, 1]} : vector<8x128xf32> to vector<8x2xf32>
    %c2_48 = arith.constant 2 : index
    %c0_49 = arith.constant 0 : index
    %c130_50 = arith.constant 130 : index
    %61 = vector.load %arg5[%c2_48, %c0_49, %c130_50] : memref<4x8x256xf32, #tpu.memory_space<vmem>>, vector<1x8x2xf32>
    %62 = vector.shape_cast %61 : vector<1x8x2xf32> to vector<8x2xf32>
    %63 = vector.shape_cast %60 : vector<8x2xf32> to vector<1x8x2xf32>
    tpu.vector_store %arg5[%c2_48, %c0_49, %c130_50], %63 {strides = array<i32>} : memref<4x8x256xf32, #tpu.memory_space<vmem>>, vector<1x8x2xf32>,
    %cst_51 = arith.constant -1.000000e+00 : f32
    %cst_52 = arith.constant 1.000000e+00 : f32
    %64 = vector.broadcast %cst_51 : f32 to vector<8x128xf32>
    %65 = arith.maximumf %64, %55 : vector<8x128xf32>
    %66 = vector.broadcast %cst_52 : f32 to vector<8x128xf32>
    %67 = arith.minimumf %66, %65 : vector<8x128xf32>
    %c3 = arith.constant 3 : index
    %c0_53 = arith.constant 0 : index
    %c0_54 = arith.constant 0 : index
    %68 = vector.load %arg5[%c3, %c0_53, %c0_54] : memref<4x8x256xf32, #tpu.memory_space<vmem>>, vector<1x8x128xf32>
    %69 = vector.shape_cast %68 : vector<1x8x128xf32> to vector<8x128xf32>
    %70 = vector.shape_cast %67 : vector<8x128xf32> to vector<1x8x128xf32>
    tpu.vector_store %arg5[%c3, %c0_53, %c0_54], %70 {strides = array<i32>} : memref<4x8x256xf32, #tpu.memory_space<vmem>>, vector<1x8x128xf32>,
    %c3_55 = arith.constant 3 : index
    %c0_56 = arith.constant 0 : index
    %c0_57 = arith.constant 0 : index
    %71 = vector.load %arg5[%c3_55, %c0_56, %c0_57] : memref<4x8x256xf32, #tpu.memory_space<vmem>>, vector<1x8x256xf32>
    %72 = vector.shape_cast %71 : vector<1x8x256xf32> to vector<8x256xf32>
    %c3_58 = arith.constant 3 : index
    %c0_59 = arith.constant 0 : index
    %c0_60 = arith.constant 0 : index
    %73 = vector.load %arg2[%c3_58, %c0_59, %c0_60] : memref<4x256x128xf32, #tpu.memory_space<vmem>>, vector<1x256x128xf32>
    %74 = vector.shape_cast %73 : vector<1x256x128xf32> to vector<256x128xf32>
    %cst_61 = arith.constant dense<0.000000e+00> : vector<8x128xf32>
    %75 = tpu.matmul %72, %74, %cst_61 {dimension_numbers = #tpu.dot_dimension_numbers<[1], [0], [0], [1], [0, 0, 1, 1], [], []>} : vector<8x256xf32>, vector<256x128xf32>, vector<8x128xf32> -> vector<8x128xf32>
    %76 = vector.extract_strided_slice %67 {offsets = [0, 0], sizes = [8, 2], strides = [1, 1]} : vector<8x128xf32> to vector<8x2xf32>
    %c3_62 = arith.constant 3 : index
    %c0_63 = arith.constant 0 : index
    %c128_64 = arith.constant 128 : index
    %77 = vector.load %arg5[%c3_62, %c0_63, %c128_64] : memref<4x8x256xf32, #tpu.memory_space<vmem>>, vector<1x8x2xf32>
    %78 = vector.shape_cast %77 : vector<1x8x2xf32> to vector<8x2xf32>
    %79 = vector.shape_cast %76 : vector<8x2xf32> to vector<1x8x2xf32>
    tpu.vector_store %arg5[%c3_62, %c0_63, %c128_64], %79 {strides = array<i32>} : memref<4x8x256xf32, #tpu.memory_space<vmem>>, vector<1x8x2xf32>,
    %80 = vector.extract_strided_slice %75 {offsets = [0, 0], sizes = [8, 2], strides = [1, 1]} : vector<8x128xf32> to vector<8x2xf32>
    %c3_65 = arith.constant 3 : index
    %c0_66 = arith.constant 0 : index
    %c130_67 = arith.constant 130 : index
    %81 = vector.load %arg5[%c3_65, %c0_66, %c130_67] : memref<4x8x256xf32, #tpu.memory_space<vmem>>, vector<1x8x2xf32>
    %82 = vector.shape_cast %81 : vector<1x8x2xf32> to vector<8x2xf32>
    %83 = vector.shape_cast %80 : vector<8x2xf32> to vector<1x8x2xf32>
    tpu.vector_store %arg5[%c3_65, %c0_66, %c130_67], %83 {strides = array<i32>} : memref<4x8x256xf32, #tpu.memory_space<vmem>>, vector<1x8x2xf32>,
    %cst_68 = arith.constant -1.000000e+00 : f32
    %cst_69 = arith.constant 1.000000e+00 : f32
    %84 = vector.broadcast %cst_68 : f32 to vector<8x128xf32>
    %85 = arith.maximumf %84, %75 : vector<8x128xf32>
    %86 = vector.broadcast %cst_69 : f32 to vector<8x128xf32>
    %87 = arith.minimumf %86, %85 : vector<8x128xf32>
    %c0_70 = arith.constant 0 : index
    %c0_71 = arith.constant 0 : index
    %88 = vector.load %arg4[%c0_70, %c0_71] : memref<8x128xf32, #tpu.memory_space<vmem>>, vector<8x128xf32>
    tpu.vector_store %arg4[%c0_70, %c0_71], %87 {strides = array<i32>} : memref<8x128xf32, #tpu.memory_space<vmem>>, vector<8x128xf32>,
    return
  }
  func.func @transform_0(%arg0: i32, %arg1: i32) -> (i32, i32, i32) {
    %c0_i32 = arith.constant 0 : i32
    %c0_i32_0 = arith.constant 0 : i32
    %c0_i32_1 = arith.constant 0 : i32
    %c0_i32_2 = arith.constant 0 : i32
    return %c0_i32, %c0_i32_0, %c0_i32_1 : i32, i32, i32
  }
  func.func @transform_1(%arg0: i32, %arg1: i32) -> (i32, i32) {
    %c0_i32 = arith.constant 0 : i32
    %0 = arith.subi %c0_i32, %arg1 : i32
    %c0_i32_0 = arith.constant 0 : i32
    return %arg0, %0 : i32, i32
  }
  func.func @transform_2(%arg0: i32, %arg1: i32) -> (i32, i32) {
    %c0_i32 = arith.constant 0 : i32
    %0 = arith.subi %c0_i32, %arg1 : i32
    %c0_i32_0 = arith.constant 0 : i32
    return %arg0, %0 : i32, i32
  }
}

</mosaic_0001>

<llo_original>
// kernel: tpu_custom_call.1
$region0: #{tpu_custom_call.1}
  #allocation0 [shape = 'u32[]', space=smem, size = 0x4, offset = 0x4, fixed_abs, tag = 'smem constant byte address 0x4 - core index']
  #allocation1 [shape = 'u32[72,128]{1,0:T(1,128)}', space=vmem, size = 0x9000, scoped, tag = 'internal scratch']
  #allocation2 [shape = 'f32[4,8,256]{2,1,0:T(8,128)}', space=vmem, size = 0x8000, scoped, tag = 'scratch operand']
  %s0 = inlined_call_operand.hbm [shape: f32[4,256,128], index: 0, kind: input, shape index: {}]
  %s1 = inlined_call_operand.hbm [shape: f32[8,64], index: 1, kind: input, shape index: {}]
  %s2 = inlined_call_operand.hbm [shape: f32[8,128], index: 2, kind: output, shape index: {}]
  %s3 = sld [smem:[#allocation0]]
  $region30: #{tpu_custom_call.1} parent=0
    _
  %s5 = ssub.s32 1, %s3
  %s6 = scalar_select 0, %s5, %s3
  $region1: #{tpu_custom_call.1} parent=0
    #allocation3 [shape = 'u8[524288]{0}', space=vmem, size = 0x80000, scoped, tag = 'input window, operand 0, single buffered']
    #allocation4 [shape = 's32[1]{0}', space=sflag, size = 0x4, scoped, tag = 'scoped memory for tpu_custom_call.1']
    #allocation5 [shape = 's32[1]{0}', space=sflag, size = 0x4, scoped, tag = 'scoped memory for tpu_custom_call.1']
    #allocation6 [shape = 'u8[4096]{0}', space=vmem, size = 0x1000, scoped, tag = 'input window, operand 1, single buffered']
    #allocation7 [shape = 's32[1]{0}', space=sflag, size = 0x4, scoped, tag = 'scoped memory for tpu_custom_call.1']
    #allocation8 [shape = 'u8[4096]{0}', space=vmem, size = 0x1000, scoped, tag = 'output window, operand 0, single buffered']
    %7 = vsyncpa [#allocation4], 0
    %8 = vsyncpa [#allocation7], 0
    %9 = vsyncpa [#allocation5], 0
    // Predicated region
    $region2: #{tpu_custom_call.1} parent=1 // pred_check
      _
    $region3: #{tpu_custom_call.1} parent=1 // pred_check_branch
      %11 = sbr.rel (0) target = $region5
    $region4: #{tpu_custom_call.1} parent=1 // pred_region
      %13 = vsyncadd [#allocation4], 0
      %s14 = sshll.u32 %s0, 4
      %s15 = int_to_ptr.hbm [resolvable:$true] %s14
      %s16 = sshll.u32 [#allocation3], 4
      %s17 = int_to_ptr.vmem [resolvable:$true] %s16
      %22 = dma.hbm_to_vmem [thread:$0]  %s15, 16384, %s17, [#allocation4], 128, 128, 8
    $region5: #{tpu_custom_call.1} parent=1 // pred_fallthru
      _
    // Predicated region
    $region6: #{tpu_custom_call.1} parent=1 // pred_check
      _
    $region7: #{tpu_custom_call.1} parent=1 // pred_check_branch
      %24 = sbr.rel (0) target = $region9
    $region8: #{tpu_custom_call.1} parent=1 // pred_region
      %s25 = ssub.s32 0, 0
      %27 = vsyncadd [#allocation7], 0
      %s28 = smul.addr %s25, 8
      %s29 = scalar_lea.hbm %s1, %s28
      %s31 = sshll.u32 %s29, 4
      %s32 = int_to_ptr.hbm [resolvable:$true] %s31
      %s33 = sshll.u32 [#allocation6], 4
      %s34 = int_to_ptr.vmem [resolvable:$true] %s33
      %36 = dma.hbm_to_vmem [thread:$0]  %s32, 128, %s34, [#allocation7]
    $region9: #{tpu_custom_call.1} parent=1 // pred_fallthru
      _
    // Predicated region
    $region10: #{tpu_custom_call.1} parent=1 // pred_check
      _
    $region11: #{tpu_custom_call.1} parent=1 // pred_check_branch
      %38 = sbr.rel (0) target = $region13
    $region12: #{tpu_custom_call.1} parent=1 // pred_region
      %40 = dma.done [#allocation4], 16384
    $region13: #{tpu_custom_call.1} parent=1 // pred_fallthru
      _
    // Predicated region
    $region14: #{tpu_custom_call.1} parent=1 // pred_check
      _
    $region15: #{tpu_custom_call.1} parent=1 // pred_check_branch
      %42 = sbr.rel (0) target = $region17
    $region16: #{tpu_custom_call.1} parent=1 // pred_region
      %44 = dma.done [#allocation7], 128
    $region17: #{tpu_custom_call.1} parent=1 // pred_fallthru
      _
    %s45 = ssub.s32 0, 0
    %s46 = ssub.s32 0, 0
    %p47 = scmp.eq.s32.totalorder 0, 0
    // Predicated region
    $region18: #{tpu_custom_call.1} parent=1 // pred_check
      %p48 = pneg %p47
    $region19: #{tpu_custom_call.1} parent=1 // pred_check_branch
      %50 = sbr.rel (%p48) target = $region21
    $region20: #{tpu_custom_call.1} parent=1 // pred_region
      %51 = vst [vmem:[#allocation2] sm:$0xff] 0.0
      %52 = vst [vmem:[#allocation2 + $0x8] sm:$0xff] 0.0
      %53 = vst [vmem:[#allocation2 + $0x10] sm:$0xff] 0.0
      %54 = vst [vmem:[#allocation2 + $0x18] sm:$0xff] 0.0
      %55 = vst [vmem:[#allocation2 + $0x20] sm:$0xff] 0.0
      %56 = vst [vmem:[#allocation2 + $0x28] sm:$0xff] 0.0
      %57 = vst [vmem:[#allocation2 + $0x30] sm:$0xff] 0.0
      %58 = vst [vmem:[#allocation2 + $0x38] sm:$0xff] 0.0
    $region21: #{tpu_custom_call.1} parent=1 // pred_fallthru
      _
    %v59 = vld [vmem:[#allocation6] sm:$0xff]
    %vm60 = vcmask 523264
    %61 = vst.msk [vmem:[#allocation2] sm:$0xff] %vm60, %v59
    %v62 = vld [vmem:[#allocation2] sm:$0xff]
    %v63 = vld [vmem:[#allocation2 + $0x8] sm:$0xff]
    %v64 = vld [vmem:[#allocation3] sm:$0xff]
    %v65 = vld [vmem:[#allocation3 + $0x8] sm:$0xff]
    %v66 = vld [vmem:[#allocation3 + $0x10] sm:$0xff]
    %v67 = vld [vmem:[#allocation3 + $0x18] sm:$0xff]
    %v68 = vld [vmem:[#allocation3 + $0x20] sm:$0xff]
    %v69 = vld [vmem:[#allocation3 + $0x28] sm:$0xff]
    %v70 = vld [vmem:[#allocation3 + $0x30] sm:$0xff]
    %v71 = vld [vmem:[#allocation3 + $0x38] sm:$0xff]
    %v72 = vld [vmem:[#allocation3 + $0x40] sm:$0xff]
    %v73 = vld [vmem:[#allocation3 + $0x48] sm:$0xff]
    %v74 = vld [vmem:[#allocation3 + $0x50] sm:$0xff]
    %v75 = vld [vmem:[#allocation3 + $0x58] sm:$0xff]
    %v76 = vld [vmem:[#allocation3 + $0x60] sm:$0xff]
    %v77 = vld [vmem:[#allocation3 + $0x68] sm:$0xff]
    %v78 = vld [vmem:[#allocation3 + $0x70] sm:$0xff]
    %v79 = vld [vmem:[#allocation3 + $0x78] sm:$0xff]
    %v80 = vld [vmem:[#allocation3 + $0x80] sm:$0xff]
    %v81 = vld [vmem:[#allocation3 + $0x88] sm:$0xff]
    %v82 = vld [vmem:[#allocation3 + $0x90] sm:$0xff]
    %v83 = vld [vmem:[#allocation3 + $0x98] sm:$0xff]
    %v84 = vld [vmem:[#allocation3 + $0xa0] sm:$0xff]
    %v85 = vld [vmem:[#allocation3 + $0xa8] sm:$0xff]
    %v86 = vld [vmem:[#allocation3 + $0xb0] sm:$0xff]
    %v87 = vld [vmem:[#allocation3 + $0xb8] sm:$0xff]
    %v88 = vld [vmem:[#allocation3 + $0xc0] sm:$0xff]
    %v89 = vld [vmem:[#allocation3 + $0xc8] sm:$0xff]
    %v90 = vld [vmem:[#allocation3 + $0xd0] sm:$0xff]
    %v91 = vld [vmem:[#allocation3 + $0xd8] sm:$0xff]
    %v92 = vld [vmem:[#allocation3 + $0xe0] sm:$0xff]
    %v93 = vld [vmem:[#allocation3 + $0xe8] sm:$0xff]
    %v94 = vld [vmem:[#allocation3 + $0xf0] sm:$0xff]
    %v95 = vld [vmem:[#allocation3 + $0xf8] sm:$0xff]
    %96 = vmatpush.msra.mxu0 %v79
    %97 = vmatpush.msra.mxu0 %v78
    %98 = vmatpush.msra.mxu0 %v77
    %99 = vmatpush.msra.mxu0 %v76
    %100 = vmatpush.msra.mxu0 %v75
    %101 = vmatpush.msra.mxu0 %v74
    %102 = vmatpush.msra.mxu0 %v73
    %103 = vmatpush.msra.mxu0 %v72
    %104 = vmatpush.msra.mxu0 %v71
    %105 = vmatpush.msra.mxu0 %v70
    %106 = vmatpush.msra.mxu0 %v69
    %107 = vmatpush.msra.mxu0 %v68
    %108 = vmatpush.msra.mxu0 %v67
    %109 = vmatpush.msra.mxu0 %v66
    %110 = vmatpush.msra.mxu0 %v65
    %111 = vmatpush.msra.mxu0 %v64
    %112 = vmatmul.f32.gmra.mxu0 %v62
    %v113 = vpop.f32.mrf.mxu0
    %v114 = vadd.f32 0.0, %v113
    %115 = vdwg.mxu0
    %116 = vmatpush.msra.mxu0 %v95
    %117 = vmatpush.msra.mxu0 %v94
    %118 = vmatpush.msra.mxu0 %v93
    %119 = vmatpush.msra.mxu0 %v92
    %120 = vmatpush.msra.mxu0 %v91
    %121 = vmatpush.msra.mxu0 %v90
    %122 = vmatpush.msra.mxu0 %v89
    %123 = vmatpush.msra.mxu0 %v88
    %124 = vmatpush.msra.mxu0 %v87
    %125 = vmatpush.msra.mxu0 %v86
    %126 = vmatpush.msra.mxu0 %v85
    %127 = vmatpush.msra.mxu0 %v84
    %128 = vmatpush.msra.mxu0 %v83
    %129 = vmatpush.msra.mxu0 %v82
    %130 = vmatpush.msra.mxu0 %v81
    %131 = vmatpush.msra.mxu0 %v80
    %132 = vmatmul.f32.gmra.mxu0 %v63
    %v133 = vpop.f32.mrf.mxu0
    %v134 = vadd.f32 %v114, %v133
    %135 = vdwg.mxu0
    %vm136 = vcmask 7168
    %137 = vst.msk [vmem:[#allocation2 + $0x8] sm:$0xff] %vm136, %v59
    %139 = vrot.lane.b32.xlu0 %v59, 1
    %v140 = vpop.permute.xlu0 %139
    %vm142 = vcmask 15368
    %143 = vst.msk [vmem:[#allocation2 + $0x8] sm:$0xff] %vm142, %v140
    %145 = vrot.lane.b32.xlu0 %v134, 2
    %v146 = vpop.permute.xlu0 %145
    %vm148 = vcmask 31760
    %149 = vst.msk [vmem:[#allocation2 + $0x8] sm:$0xff] %vm148, %v146
    %v150 = vmax.f32 %v134, -1.0
    %v151 = vmin.f32 %v150, 1.0
    %s152 = scalar_lea.vmem [#allocation2], 16
    %153 = vst [vmem:[%s152] sm:$0xff] %v151
    %v154 = vld [vmem:[%s152] sm:$0xff]
    %v155 = vld [vmem:[%s152 + $0x8] sm:$0xff]
    %s156 = scalar_lea.vmem [#allocation3], 256
    %v157 = vld [vmem:[%s156] sm:$0xff]
    %v158 = vld [vmem:[%s156 + $0x8] sm:$0xff]
    %v159 = vld [vmem:[%s156 + $0x10] sm:$0xff]
    %v160 = vld [vmem:[%s156 + $0x18] sm:$0xff]
    %v161 = vld [vmem:[%s156 + $0x20] sm:$0xff]
    %v162 = vld [vmem:[%s156 + $0x28] sm:$0xff]
    %v163 = vld [vmem:[%s156 + $0x30] sm:$0xff]
    %v164 = vld [vmem:[%s156 + $0x38] sm:$0xff]
    %v165 = vld [vmem:[%s156 + $0x40] sm:$0xff]
    %v166 = vld [vmem:[%s156 + $0x48] sm:$0xff]
    %v167 = vld [vmem:[%s156 + $0x50] sm:$0xff]
    %v168 = vld [vmem:[%s156 + $0x58] sm:$0xff]
    %v169 = vld [vmem:[%s156 + $0x60] sm:$0xff]
    %v170 = vld [vmem:[%s156 + $0x68] sm:$0xff]
    %v171 = vld [vmem:[%s156 + $0x70] sm:$0xff]
    %v172 = vld [vmem:[%s156 + $0x78] sm:$0xff]
    %v173 = vld [vmem:[%s156 + $0x80] sm:$0xff]
    %v174 = vld [vmem:[%s156 + $0x88] sm:$0xff]
    %v175 = vld [vmem:[%s156 + $0x90] sm:$0xff]
    %v176 = vld [vmem:[%s156 + $0x98] sm:$0xff]
    %v177 = vld [vmem:[%s156 + $0xa0] sm:$0xff]
    %v178 = vld [vmem:[%s156 + $0xa8] sm:$0xff]
    %v179 = vld [vmem:[%s156 + $0xb0] sm:$0xff]
    %v180 = vld [vmem:[%s156 + $0xb8] sm:$0xff]
    %v181 = vld [vmem:[%s156 + $0xc0] sm:$0xff]
    %v182 = vld [vmem:[%s156 + $0xc8] sm:$0xff]
    %v183 = vld [vmem:[%s156 + $0xd0] sm:$0xff]
    %v184 = vld [vmem:[%s156 + $0xd8] sm:$0xff]
    %v185 = vld [vmem:[%s156 + $0xe0] sm:$0xff]
    %v186 = vld [vmem:[%s156 + $0xe8] sm:$0xff]
    %v187 = vld [vmem:[%s156 + $0xf0] sm:$0xff]
    %v188 = vld [vmem:[%s156 + $0xf8] sm:$0xff]
    %189 = vmatpush.msra.mxu0 %v172
    %190 = vmatpush.msra.mxu0 %v171
    %191 = vmatpush.msra.mxu0 %v170
    %192 = vmatpush.msra.mxu0 %v169
    %193 = vmatpush.msra.mxu0 %v168
    %194 = vmatpush.msra.mxu0 %v167
    %195 = vmatpush.msra.mxu0 %v166
    %196 = vmatpush.msra.mxu0 %v165
    %197 = vmatpush.msra.mxu0 %v164
    %198 = vmatpush.msra.mxu0 %v163
    %199 = vmatpush.msra.mxu0 %v162
    %200 = vmatpush.msra.mxu0 %v161
    %201 = vmatpush.msra.mxu0 %v160
    %202 = vmatpush.msra.mxu0 %v159
    %203 = vmatpush.msra.mxu0 %v158
    %204 = vmatpush.msra.mxu0 %v157
    %205 = vmatmul.f32.gmra.mxu0 %v154
    %v206 = vpop.f32.mrf.mxu0
    %v207 = vadd.f32 0.0, %v206
    %208 = vdwg.mxu0
    %209 = vmatpush.msra.mxu0 %v188
    %210 = vmatpush.msra.mxu0 %v187
    %211 = vmatpush.msra.mxu0 %v186
    %212 = vmatpush.msra.mxu0 %v185
    %213 = vmatpush.msra.mxu0 %v184
    %214 = vmatpush.msra.mxu0 %v183
    %215 = vmatpush.msra.mxu0 %v182
    %216 = vmatpush.msra.mxu0 %v181
    %217 = vmatpush.msra.mxu0 %v180
    %218 = vmatpush.msra.mxu0 %v179
    %219 = vmatpush.msra.mxu0 %v178
    %220 = vmatpush.msra.mxu0 %v177
    %221 = vmatpush.msra.mxu0 %v176
    %222 = vmatpush.msra.mxu0 %v175
    %223 = vmatpush.msra.mxu0 %v174
    %224 = vmatpush.msra.mxu0 %v173
    %225 = vmatmul.f32.gmra.mxu0 %v155
    %v226 = vpop.f32.mrf.mxu0
    %v227 = vadd.f32 %v207, %v226
    %228 = vdwg.mxu0
    %vm229 = vcmask 15360
    %230 = vst.msk [vmem:[%s152 + $0x8] sm:$0xff] %vm229, %v151
    %232 = vrot.lane.b32.xlu0 %v227, 2
    %v233 = vpop.permute.xlu0 %232
    %235 = vst.msk [vmem:[%s152 + $0x8] sm:$0xff] %vm148, %v233
    %v236 = vmax.f32 %v227, -1.0
    %v237 = vmin.f32 %v236, 1.0
    %s238 = scalar_lea.vmem [#allocation2], 32
    %239 = vst [vmem:[%s238] sm:$0xff] %v237
    %v240 = vld [vmem:[%s238] sm:$0xff]
    %v241 = vld [vmem:[%s238 + $0x8] sm:$0xff]
    %s242 = scalar_lea.vmem [#allocation3], 512
    %v243 = vld [vmem:[%s242] sm:$0xff]
    %v244 = vld [vmem:[%s242 + $0x8] sm:$0xff]
    %v245 = vld [vmem:[%s242 + $0x10] sm:$0xff]
    %v246 = vld [vmem:[%s242 + $0x18] sm:$0xff]
    %v247 = vld [vmem:[%s242 + $0x20] sm:$0xff]
    %v248 = vld [vmem:[%s242 + $0x28] sm:$0xff]
    %v249 = vld [vmem:[%s242 + $0x30] sm:$0xff]
    %v250 = vld [vmem:[%s242 + $0x38] sm:$0xff]
    %v251 = vld [vmem:[%s242 + $0x40] sm:$0xff]
    %v252 = vld [vmem:[%s242 + $0x48] sm:$0xff]
    %v253 = vld [vmem:[%s242 + $0x50] sm:$0xff]
    %v254 = vld [vmem:[%s242 + $0x58] sm:$0xff]
    %v255 = vld [vmem:[%s242 + $0x60] sm:$0xff]
    %v256 = vld [vmem:[%s242 + $0x68] sm:$0xff]
    %v257 = vld [vmem:[%s242 + $0x70] sm:$0xff]
    %v258 = vld [vmem:[%s242 + $0x78] sm:$0xff]
    %v259 = vld [vmem:[%s242 + $0x80] sm:$0xff]
    %v260 = vld [vmem:[%s242 + $0x88] sm:$0xff]
    %v261 = vld [vmem:[%s242 + $0x90] sm:$0xff]
    %v262 = vld [vmem:[%s242 + $0x98] sm:$0xff]
    %v263 = vld [vmem:[%s242 + $0xa0] sm:$0xff]
    %v264 = vld [vmem:[%s242 + $0xa8] sm:$0xff]
    %v265 = vld [vmem:[%s242 + $0xb0] sm:$0xff]
    %v266 = vld [vmem:[%s242 + $0xb8] sm:$0xff]
    %v267 = vld [vmem:[%s242 + $0xc0] sm:$0xff]
    %v268 = vld [vmem:[%s242 + $0xc8] sm:$0xff]
    %v269 = vld [vmem:[%s242 + $0xd0] sm:$0xff]
    %v270 = vld [vmem:[%s242 + $0xd8] sm:$0xff]
    %v271 = vld [vmem:[%s242 + $0xe0] sm:$0xff]
    %v272 = vld [vmem:[%s242 + $0xe8] sm:$0xff]
    %v273 = vld [vmem:[%s242 + $0xf0] sm:$0xff]
    %v274 = vld [vmem:[%s242 + $0xf8] sm:$0xff]
    %275 = vmatpush.msra.mxu0 %v258
    %276 = vmatpush.msra.mxu0 %v257
    %277 = vmatpush.msra.mxu0 %v256
    %278 = vmatpush.msra.mxu0 %v255
    %279 = vmatpush.msra.mxu0 %v254
    %280 = vmatpush.msra.mxu0 %v253
    %281 = vmatpush.msra.mxu0 %v252
    %282 = vmatpush.msra.mxu0 %v251
    %283 = vmatpush.msra.mxu0 %v250
    %284 = vmatpush.msra.mxu0 %v249
    %285 = vmatpush.msra.mxu0 %v248
    %286 = vmatpush.msra.mxu0 %v247
    %287 = vmatpush.msra.mxu0 %v246
    %288 = vmatpush.msra.mxu0 %v245
    %289 = vmatpush.msra.mxu0 %v244
    %290 = vmatpush.msra.mxu0 %v243
    %291 = vmatmul.f32.gmra.mxu0 %v240
    %v292 = vpop.f32.mrf.mxu0
    %v293 = vadd.f32 0.0, %v292
    %294 = vdwg.mxu0
    %295 = vmatpush.msra.mxu0 %v274
    %296 = vmatpush.msra.mxu0 %v273
    %297 = vmatpush.msra.mxu0 %v272
    %298 = vmatpush.msra.mxu0 %v271
    %299 = vmatpush.msra.mxu0 %v270
    %300 = vmatpush.msra.mxu0 %v269
    %301 = vmatpush.msra.mxu0 %v268
    %302 = vmatpush.msra.mxu0 %v267
    %303 = vmatpush.msra.mxu0 %v266
    %304 = vmatpush.msra.mxu0 %v265
    %305 = vmatpush.msra.mxu0 %v264
    %306 = vmatpush.msra.mxu0 %v263
    %307 = vmatpush.msra.mxu0 %v262
    %308 = vmatpush.msra.mxu0 %v261
    %309 = vmatpush.msra.mxu0 %v260
    %310 = vmatpush.msra.mxu0 %v259
    %311 = vmatmul.f32.gmra.mxu0 %v241
    %v312 = vpop.f32.mrf.mxu0
    %v313 = vadd.f32 %v293, %v312
    %314 = vdwg.mxu0
    %315 = vst.msk [vmem:[%s238 + $0x8] sm:$0xff] %vm229, %v237
    %317 = vrot.lane.b32.xlu0 %v313, 2
    %v318 = vpop.permute.xlu0 %317
    %320 = vst.msk [vmem:[%s238 + $0x8] sm:$0xff] %vm148, %v318
    %v321 = vmax.f32 %v313, -1.0
    %v322 = vmin.f32 %v321, 1.0
    %s323 = scalar_lea.vmem [#allocation2], 48
    %324 = vst [vmem:[%s323] sm:$0xff] %v322
    %v325 = vld [vmem:[%s323] sm:$0xff]
    %v326 = vld [vmem:[%s323 + $0x8] sm:$0xff]
    %s327 = scalar_lea.vmem [#allocation3], 768
    %v328 = vld [vmem:[%s327] sm:$0xff]
    %v329 = vld [vmem:[%s327 + $0x8] sm:$0xff]
    %v330 = vld [vmem:[%s327 + $0x10] sm:$0xff]
    %v331 = vld [vmem:[%s327 + $0x18] sm:$0xff]
    %v332 = vld [vmem:[%s327 + $0x20] sm:$0xff]
    %v333 = vld [vmem:[%s327 + $0x28] sm:$0xff]
    %v334 = vld [vmem:[%s327 + $0x30] sm:$0xff]
    %v335 = vld [vmem:[%s327 + $0x38] sm:$0xff]
    %v336 = vld [vmem:[%s327 + $0x40] sm:$0xff]
    %v337 = vld [vmem:[%s327 + $0x48] sm:$0xff]
    %v338 = vld [vmem:[%s327 + $0x50] sm:$0xff]
    %v339 = vld [vmem:[%s327 + $0x58] sm:$0xff]
    %v340 = vld [vmem:[%s327 + $0x60] sm:$0xff]
    %v341 = vld [vmem:[%s327 + $0x68] sm:$0xff]
    %v342 = vld [vmem:[%s327 + $0x70] sm:$0xff]
    %v343 = vld [vmem:[%s327 + $0x78] sm:$0xff]
    %v344 = vld [vmem:[%s327 + $0x80] sm:$0xff]
    %v345 = vld [vmem:[%s327 + $0x88] sm:$0xff]
    %v346 = vld [vmem:[%s327 + $0x90] sm:$0xff]
    %v347 = vld [vmem:[%s327 + $0x98] sm:$0xff]
    %v348 = vld [vmem:[%s327 + $0xa0] sm:$0xff]
    %v349 = vld [vmem:[%s327 + $0xa8] sm:$0xff]
    %v350 = vld [vmem:[%s327 + $0xb0] sm:$0xff]
    %v351 = vld [vmem:[%s327 + $0xb8] sm:$0xff]
    %v352 = vld [vmem:[%s327 + $0xc0] sm:$0xff]
    %v353 = vld [vmem:[%s327 + $0xc8] sm:$0xff]
    %v354 = vld [vmem:[%s327 + $0xd0] sm:$0xff]
    %v355 = vld [vmem:[%s327 + $0xd8] sm:$0xff]
    %v356 = vld [vmem:[%s327 + $0xe0] sm:$0xff]
    %v357 = vld [vmem:[%s327 + $0xe8] sm:$0xff]
    %v358 = vld [vmem:[%s327 + $0xf0] sm:$0xff]
    %v359 = vld [vmem:[%s327 + $0xf8] sm:$0xff]
    %360 = vmatpush.msra.mxu0 %v343
    %361 = vmatpush.msra.mxu0 %v342
    %362 = vmatpush.msra.mxu0 %v341
    %363 = vmatpush.msra.mxu0 %v340
    %364 = vmatpush.msra.mxu0 %v339
    %365 = vmatpush.msra.mxu0 %v338
    %366 = vmatpush.msra.mxu0 %v337
    %367 = vmatpush.msra.mxu0 %v336
    %368 = vmatpush.msra.mxu0 %v335
    %369 = vmatpush.msra.mxu0 %v334
    %370 = vmatpush.msra.mxu0 %v333
    %371 = vmatpush.msra.mxu0 %v332
    %372 = vmatpush.msra.mxu0 %v331
    %373 = vmatpush.msra.mxu0 %v330
    %374 = vmatpush.msra.mxu0 %v329
    %375 = vmatpush.msra.mxu0 %v328
    %376 = vmatmul.f32.gmra.mxu0 %v325
    %v377 = vpop.f32.mrf.mxu0
    %v378 = vadd.f32 0.0, %v377
    %379 = vdwg.mxu0
    %380 = vmatpush.msra.mxu0 %v359
    %381 = vmatpush.msra.mxu0 %v358
    %382 = vmatpush.msra.mxu0 %v357
    %383 = vmatpush.msra.mxu0 %v356
    %384 = vmatpush.msra.mxu0 %v355
    %385 = vmatpush.msra.mxu0 %v354
    %386 = vmatpush.msra.mxu0 %v353
    %387 = vmatpush.msra.mxu0 %v352
    %388 = vmatpush.msra.mxu0 %v351
    %389 = vmatpush.msra.mxu0 %v350
    %390 = vmatpush.msra.mxu0 %v349
    %391 = vmatpush.msra.mxu0 %v348
    %392 = vmatpush.msra.mxu0 %v347
    %393 = vmatpush.msra.mxu0 %v346
    %394 = vmatpush.msra.mxu0 %v345
    %395 = vmatpush.msra.mxu0 %v344
    %396 = vmatmul.f32.gmra.mxu0 %v326
    %v397 = vpop.f32.mrf.mxu0
    %v398 = vadd.f32 %v378, %v397
    %399 = vdwg.mxu0
    %400 = vst.msk [vmem:[%s323 + $0x8] sm:$0xff] %vm229, %v322
    %402 = vrot.lane.b32.xlu0 %v398, 2
    %v403 = vpop.permute.xlu0 %402
    %405 = vst.msk [vmem:[%s323 + $0x8] sm:$0xff] %vm148, %v403
    %v406 = vmax.f32 %v398, -1.0
    %v407 = vmin.f32 %v406, 1.0
    %408 = vst [vmem:[#allocation8] sm:$0xff] %v407
    // Predicated region
    $region22: #{tpu_custom_call.1} parent=1 // pred_check
      _
    $region23: #{tpu_custom_call.1} parent=1 // pred_check_branch
      %410 = sbr.rel (0) target = $region25
    $region24: #{tpu_custom_call.1} parent=1 // pred_region
      %s411 = ssub.s32 0, 0
      %413 = vsyncadd [#allocation5], 0
      %s414 = smul.addr %s411, 8
      %s415 = scalar_lea.hbm %s2, %s414
      %s417 = sshll.u32 [#allocation8], 4
      %s418 = int_to_ptr.vmem [resolvable:$true] %s417
      %s419 = sshll.u32 %s415, 4
      %s420 = int_to_ptr.hbm [resolvable:$true] %s419
      %422 = dma.vmem_to_hbm [thread:$0]  %s418, 128, %s420, [#allocation5]
    $region25: #{tpu_custom_call.1} parent=1 // pred_fallthru
      _
    // Predicated region
    $region26: #{tpu_custom_call.1} parent=1 // pred_check
      _
    $region27: #{tpu_custom_call.1} parent=1 // pred_check_branch
      %424 = sbr.rel (0) target = $region29
    $region28: #{tpu_custom_call.1} parent=1 // pred_region
      %426 = dma.done [#allocation5], 128
    $region29: #{tpu_custom_call.1} parent=1 // pred_fallthru
      _
    %427 = vsyncpa [#allocation4], 1
    %428 = vsyncpa [#allocation7], 1
    %429 = vsyncpa [#allocation5], 1

</llo_original>
